<compile_context>
chip_gen: v5e
topology: v5e:2x2
jax: 0.10.0
libtpu: 0.0.40
codegen_flags: <defaults>
</compile_context>

<pallas_src>
import functools

import jax
import jax.numpy as jnp
from jax import lax
from jax.experimental import pallas as pl
from jax.experimental.pallas import tpu as pltpu

PAD_IDX = 1  # esm1_alphabet.padding_idx
CLS_IDX = 0  # esm1_alphabet.cls_idx

# row layout of the packed per-layer vector array `vecs` (L, 9, D)
LN1_W, LN1_B, BQ, BK, BV, BO, LN2_W, LN2_B, BFF2 = range(9)


def _layer_norm(x, w, b, eps=1e-5):
    mu = jnp.mean(x, axis=-1, keepdims=True)
    var = jnp.mean((x - mu) ** 2, axis=-1, keepdims=True)
    return (x - mu) * lax.rsqrt(var + eps) * w + b


def _gelu_exact(x):
    # ESM gelu: x * 0.5 * (1 + erf(x / sqrt(2)))
    return x * 0.5 * (1.0 + lax.erf(x / jnp.sqrt(jnp.float32(2.0))))


def _stack_kernel(x_ref, bias_ref, wqkv_ref, wo_ref, w1_ref, w2_ref,
                  vecs_ref, b1_ref, out_ref, *, num_heads):
    """grid = (batch, layer).  The hidden state IS the resident output block."""
    l = pl.program_id(1)
    S, D = out_ref.shape[1], out_ref.shape[2]
    H = num_heads
    hd = D // H
    scale = 1.0 / (hd ** 0.5)

    @pl.when(l == 0)
    def _():
        # embeddings (already emb-LayerNormed + pad-zeroed in glue) seed the hidden block
        out_ref[...] = x_ref[...]

    h = out_ref[0]                                        # (S, D) f32 hidden state
    vecs = vecs_ref[0]                                    # (9, D) packed per-layer vectors

    # ---- self-attention sublayer (pre-LN) ----
    xn = _layer_norm(h, vecs[LN1_W:LN1_W + 1], vecs[LN1_B:LN1_B + 1])
    qkv = jnp.dot(xn.astype(jnp.bfloat16), wqkv_ref[0],   # fused q|k|v projection (bf16 MXU)
                  preferred_element_type=jnp.float32)     # (S, 3D) f32
    q = (qkv[:, 0 * D:1 * D] + vecs[BQ:BQ + 1]) * scale
    k = qkv[:, 1 * D:2 * D] + vecs[BK:BK + 1]
    v = qkv[:, 2 * D:3 * D] + vecs[BV:BV + 1]

    # split heads into a leading batch dim so ALL heads go through one batched contraction.
    # TODO(synk): at production scale replace the slice+stack/concat head split with
    #             pltpu.einshape("s(hd)->hsd") to make the relayout copy-free.
    q_h = jnp.stack([q[:, i * hd:(i + 1) * hd] for i in range(H)], axis=0)   # (H, S, hd)
    k_h = jnp.stack([k[:, i * hd:(i + 1) * hd] for i in range(H)], axis=0)
    v_h = jnp.stack([v[:, i * hd:(i + 1) * hd] for i in range(H)], axis=0)

    logits = jnp.einsum("hqd,hkd->hqk",
                        q_h.astype(jnp.bfloat16), k_h.astype(jnp.bfloat16),
                        preferred_element_type=jnp.float32)                  # (H, S, S) f32
    logits = logits + bias_ref[...]                       # (1, 1, S) additive key-pad bias
    m = jnp.max(logits, axis=-1, keepdims=True)
    p = jnp.exp(logits - m)
    # EUP reciprocal instead of a VALU divide (small documented numeric deviation)
    p = p * pl.reciprocal(jnp.sum(p, axis=-1, keepdims=True), approx=True)
    ctx_h = jnp.einsum("hqk,hkd->hqd",
                       p.astype(jnp.bfloat16), v_h.astype(jnp.bfloat16),
                       preferred_element_type=jnp.float32)                   # (H, S, hd) f32
    ctx = jnp.concatenate([ctx_h[i] for i in range(H)], axis=-1)             # (S, D) f32

    attn_out = jnp.dot(ctx.astype(jnp.bfloat16), wo_ref[0],
                       preferred_element_type=jnp.float32) + vecs[BO:BO + 1]
    h = h + attn_out

    # ---- feed-forward sublayer (pre-LN, exact GELU) ----
    xn2 = _layer_norm(h, vecs[LN2_W:LN2_W + 1], vecs[LN2_B:LN2_B + 1])
    ff = jnp.dot(xn2.astype(jnp.bfloat16), w1_ref[0],
                 preferred_element_type=jnp.float32) + b1_ref[0]
    ff = _gelu_exact(ff)
    ff = jnp.dot(ff.astype(jnp.bfloat16), w2_ref[0],
                 preferred_element_type=jnp.float32) + vecs[BFF2:BFF2 + 1]
    h = h + ff

    out_ref[0] = h                                        # write the resident block every step


def _head_kernel(cls_ref, lnf_ref, hw1_ref, hb1_ref, hw2_ref, hb2_ref, out_ref):
    """emb_layer_norm_after (on the CLS token) + ValuePredictionHead MLP."""
    cls = _layer_norm(cls_ref[...], lnf_ref[0:1], lnf_ref[1:2])              # (B, D) f32
    mid = jnp.dot(cls.astype(jnp.bfloat16), hw1_ref[...],
                  preferred_element_type=jnp.float32) + hb1_ref[...]         # (B, 512)
    mid = jnp.maximum(mid, 0.0)                                              # ReLU
    # Linear(512, 1) as a VPU reduction (avoids an N=1 MXU matmul / narrow masked store)
    val = jnp.sum(mid * hw2_ref[...].astype(jnp.float32), axis=-1, keepdims=True)
    val = val + hb2_ref[0, 0]                                                # SMEM scalar bias
    out_ref[...] = jnp.broadcast_to(val, out_ref.shape)                      # lane-dense slab


def init_params(key, vocab, max_len, D, L, F, head_hidden):
    ks = jax.random.split(key, 8)

    def w(k, shape, scale=0.02, dtype=jnp.bfloat16):
        return (scale * jax.random.normal(k, shape)).astype(dtype)

    vecs = jnp.zeros((L, 9, D), jnp.float32)
    vecs = vecs.at[:, LN1_W].set(1.0).at[:, LN2_W].set(1.0)   # LN weights = 1, biases = 0
    lnf = jnp.zeros((2, D), jnp.float32).at[0].set(1.0)       # [weight; bias] of final LN

    return dict(
        embed_tokens=w(ks[0], (vocab, D), dtype=jnp.float32),
        embed_positions=w(ks[1], (max_len, D), dtype=jnp.float32),
        emb_ln_w=jnp.ones((D,), jnp.float32), emb_ln_b=jnp.zeros((D,), jnp.float32),
        wqkv=w(ks[2], (L, D, 3 * D)),                         # fused q|k|v weight, bf16
        wo=w(ks[3], (L, D, D)),                               # bf16
        ffn_w1=w(ks[4], (L, D, F)),                           # bf16
        ffn_b1=jnp.zeros((L, 1, F), jnp.float32),
        ffn_w2=w(ks[5], (L, F, D)),                           # bf16
        vecs=vecs,                                            # packed per-layer D-wide vectors
        lnf=lnf,
        head_w1=w(ks[6], (D, head_hidden)),                   # bf16
        head_b1=jnp.zeros((1, head_hidden), jnp.float32),
        head_w2t=w(ks[7], (1, head_hidden)),                  # Linear(512,1) weight, transposed
        head_b2=jnp.zeros((1, 1), jnp.float32),
    )


def protein_bert_value_prediction(params, input_ids, *, num_heads, targets=None):
    B, S = input_ids.shape
    D = params['embed_tokens'].shape[1]
    L = params['wqkv'].shape[0]
    F = params['ffn_w1'].shape[2]

    # ---- glue: embedding gather + positions + emb_layer_norm_before + pad zeroing ----
    x = params['embed_tokens'][input_ids] + params['embed_positions'][:S][None, :, :]
    x = _layer_norm(x.astype(jnp.float32), params['emb_ln_w'], params['emb_ln_b'])
    pad = (input_ids == PAD_IDX)
    x = jnp.where(pad[:, :, None], 0.0, x)
    # additive key-padding bias, shaped (B, 1, S) for broadcast over (H, Sq, Sk)
    bias = jnp.where(pad, -1e9, 0.0).astype(jnp.float32)[:, None, :]

    def per_batch(tail):
        return pl.BlockSpec((1,) + tail, lambda b, l: (b,) + (0,) * len(tail))

    def per_layer(tail):
        return pl.BlockSpec((1,) + tail, lambda b, l: (l,) + (0,) * len(tail))

    stack = pl.pallas_call(
        functools.partial(_stack_kernel, num_heads=num_heads),
        out_shape=jax.ShapeDtypeStruct((B, S, D), jnp.float32),
        grid_spec=pltpu.PrefetchScalarGridSpec(
            num_scalar_prefetch=0,
            grid=(B, L),                      # batch (parallel / megacore) x layers (arbitrary)
            in_specs=[
                per_batch((S, D)),            # x       (only read at l == 0)
                per_batch((1, S)),            # additive key-pad bias
                per_layer((D, 3 * D)),        # wqkv    (bf16)
                per_layer((D, D)),            # wo      (bf16)
                per_layer((D, F)),            # ffn_w1  (bf16)
                per_layer((F, D)),            # ffn_w2  (bf16)
                per_layer((9, D)),            # packed per-layer vectors (f32)
                per_layer((1, F)),            # ffn_b1  (f32)
            ],
            out_specs=per_batch((S, D)),      # hidden state, resident across the layer axis
        ),
        compiler_params=pltpu.CompilerParams(
            dimension_semantics=("parallel", "arbitrary")),
    )
    # TODO(synk): at ESM-1b scale (D=1280, F=5120) stream ffn_w1/ffn_w2 from HBM
    #             (memory_space=pl.ANY + pltpu.emit_pipeline over F-chunks), raise
    #             vmem_limit_bytes, and consider pipeline_mode=pl.Buffered(3) on v6e.

    hidden = stack(x, bias, params['wqkv'], params['wo'],
                   params['ffn_w1'], params['ffn_w2'],
                   params['vecs'], params['ffn_b1'])

    # Pooler('cls'): slice the CLS token in glue -> head kernel only moves B*D bytes
    cls_tok = hidden[:, 0, :]

    vmem = pl.BlockSpec(memory_space=pltpu.MemorySpace.VMEM)
    head = pl.pallas_call(
        _head_kernel,
        out_shape=jax.ShapeDtypeStruct((B, 128), jnp.float32),   # lane-dense output slab
        in_specs=[vmem, vmem, vmem, vmem, vmem,
                  pl.BlockSpec(memory_space=pltpu.MemorySpace.SMEM)],
        out_specs=vmem,
    )
    value_slab = head(cls_tok, params['lnf'], params['head_w1'], params['head_b1'],
                      params['head_w2t'], params['head_b2'])
    value_pred = value_slab[:, :1]                               # (B, 1)

    if targets is not None:
        loss = jnp.mean((value_pred - targets) ** 2)             # MSELoss (glue)
        return loss, value_pred
    return value_pred


if __name__ == "__main__":
    B, S, D, H, L, F = 2, 8, 32, 4, 2, 128
    HEAD_HIDDEN = 512
    VOCAB = 33        # ESM alphabet size
    MAX_LEN = 64

    key = jax.random.PRNGKey(0)
    pkey, ikey = jax.random.split(key)
    params = init_params(pkey, VOCAB, MAX_LEN, D, L, F, HEAD_HIDDEN)

    ids = jax.random.randint(ikey, (B, S), 4, 29, dtype=jnp.int32)
    ids = ids.at[:, 0].set(CLS_IDX)        # <cls> token at position 0
    ids = ids.at[1, -2:].set(PAD_IDX)      # some padding to exercise the mask

    value_pred = protein_bert_value_prediction(params, ids, num_heads=H, targets=None)
    value_pred = jax.block_until_ready(value_pred)
    assert value_pred.shape == (B, 1) and value_pred.dtype == jnp.float32
    print("KERNEL_OK")
</pallas_src>

<mosaic_0001>
module attributes {stable_mosaic.version = 11 : i64} {
  func.func @_stack_kernel(%arg0: i32, %arg1: i32, %arg2: memref<1x8x32xf32, #tpu.memory_space<vmem>>, %arg3: memref<1x1x8xf32, #tpu.memory_space<vmem>>, %arg4: memref<1x32x96xbf16, #tpu.memory_space<vmem>>, %arg5: memref<1x32x32xbf16, #tpu.memory_space<vmem>>, %arg6: memref<1x32x128xbf16, #tpu.memory_space<vmem>>, %arg7: memref<1x128x32xbf16, #tpu.memory_space<vmem>>, %arg8: memref<1x9x32xf32, #tpu.memory_space<vmem>>, %arg9: memref<1x1x128xf32, #tpu.memory_space<vmem>>, %arg10: memref<1x8x32xf32, #tpu.memory_space<vmem>>) attributes {dimension_semantics = [#tpu.dimension_semantics<parallel>, #tpu.dimension_semantics<arbitrary>], iteration_bounds = array<i64: 2, 2>, scalar_prefetch = 0 : i64, scratch_operands = 0 : i64, tpu.core_type = #tpu.core_type<tc>, window_params = [{transform_indices = @transform_0, window_bounds = array<i64: 1, 8, 32>}, {transform_indices = @transform_1, window_bounds = array<i64: 1, 1, 8>}, {transform_indices = @transform_2, window_bounds = array<i64: 1, 32, 96>}, {transform_indices = @transform_3, window_bounds = array<i64: 1, 32, 32>}, {transform_indices = @transform_4, window_bounds = array<i64: 1, 32, 128>}, {transform_indices = @transform_5, window_bounds = array<i64: 1, 128, 32>}, {transform_indices = @transform_6, window_bounds = array<i64: 1, 9, 32>}, {transform_indices = @transform_7, window_bounds = array<i64: 1, 1, 128>}, {transform_indices = @transform_8, window_bounds = array<i64: 1, 8, 32>}]} {
    %c0_i32 = arith.constant 0 : i32
    %0 = arith.cmpi eq, %arg1, %c0_i32 : i32
    %1 = arith.extui %0 : i1 to i32
    %c0_i32_0 = arith.constant 0 : i32
    %2 = arith.cmpi ne, %1, %c0_i32_0 : i32
    scf.if %2 {
      %c0_48 = arith.constant 0 : index
      %c0_49 = arith.constant 0 : index
      %c0_50 = arith.constant 0 : index
      %164 = vector.load %arg2[%c0_48, %c0_49, %c0_50] : memref<1x8x32xf32, #tpu.memory_space<vmem>>, vector<1x8x32xf32>
      %c0_51 = arith.constant 0 : index
      %c0_52 = arith.constant 0 : index
      %c0_53 = arith.constant 0 : index
      %165 = vector.load %arg10[%c0_51, %c0_52, %c0_53] : memref<1x8x32xf32, #tpu.memory_space<vmem>>, vector<1x8x32xf32>
      tpu.vector_store %arg10[%c0_51, %c0_52, %c0_53], %164 {strides = array<i32>} : memref<1x8x32xf32, #tpu.memory_space<vmem>>, vector<1x8x32xf32>,
    } else {
    }
    %c0 = arith.constant 0 : index
    %c0_1 = arith.constant 0 : index
    %c0_2 = arith.constant 0 : index
    %3 = vector.load %arg10[%c0, %c0_1, %c0_2] : memref<1x8x32xf32, #tpu.memory_space<vmem>>, vector<1x8x32xf32>
    %4 = vector.shape_cast %3 : vector<1x8x32xf32> to vector<8x32xf32>
    %c0_3 = arith.constant 0 : index
    %c0_4 = arith.constant 0 : index
    %c0_5 = arith.constant 0 : index
    %5 = vector.load %arg8[%c0_3, %c0_4, %c0_5] : memref<1x9x32xf32, #tpu.memory_space<vmem>>, vector<1x9x32xf32>
    %6 = vector.shape_cast %5 : vector<1x9x32xf32> to vector<9x32xf32>
    %7 = vector.extract_strided_slice %6 {offsets = [0, 0], sizes = [1, 32], strides = [1, 1]} : vector<9x32xf32> to vector<1x32xf32>
    %8 = vector.extract_strided_slice %6 {offsets = [1, 0], sizes = [1, 32], strides = [1, 1]} : vector<9x32xf32> to vector<1x32xf32>
    %cst = arith.constant dense<0.000000e+00> : vector<8xf32>
    %9 = vector.multi_reduction <add>, %4, %cst [1] : vector<8x32xf32> to vector<8xf32>
    %10 = vector.shape_cast %9 : vector<8xf32> to vector<8x1xf32>
    %cst_6 = arith.constant 3.200000e+01 : f32
    %11 = vector.broadcast %cst_6 : f32 to vector<8x1xf32>
    %12 = arith.divf %10, %11 : vector<8x1xf32>
    %13 = vector.broadcast %12 : vector<8x1xf32> to vector<8x32xf32>
    %14 = arith.subf %4, %13 : vector<8x32xf32>
    %15 = arith.mulf %14, %14 : vector<8x32xf32>
    %cst_7 = arith.constant dense<0.000000e+00> : vector<8xf32>
    %16 = vector.multi_reduction <add>, %15, %cst_7 [1] : vector<8x32xf32> to vector<8xf32>
    %17 = vector.shape_cast %16 : vector<8xf32> to vector<8x1xf32>
    %cst_8 = arith.constant 3.200000e+01 : f32
    %18 = vector.broadcast %cst_8 : f32 to vector<8x1xf32>
    %19 = arith.divf %17, %18 : vector<8x1xf32>
    %20 = vector.broadcast %12 : vector<8x1xf32> to vector<8x32xf32>
    %21 = arith.subf %4, %20 : vector<8x32xf32>
    %cst_9 = arith.constant 9.99999974E-6 : f32
    %22 = vector.broadcast %cst_9 : f32 to vector<8x1xf32>
    %23 = arith.addf %19, %22 : vector<8x1xf32>
    %24 = math.rsqrt %23 : vector<8x1xf32>
    %25 = vector.broadcast %24 : vector<8x1xf32> to vector<8x32xf32>
    %26 = arith.mulf %21, %25 : vector<8x32xf32>
    %27 = vector.broadcast %7 : vector<1x32xf32> to vector<8x32xf32>
    %28 = arith.mulf %26, %27 : vector<8x32xf32>
    %29 = vector.broadcast %8 : vector<1x32xf32> to vector<8x32xf32>
    %30 = arith.addf %28, %29 : vector<8x32xf32>
    %31 = arith.truncf %30 : vector<8x32xf32> to vector<8x32xbf16>
    %c0_10 = arith.constant 0 : index
    %c0_11 = arith.constant 0 : index
    %c0_12 = arith.constant 0 : index
    %32 = vector.load %arg4[%c0_10, %c0_11, %c0_12] : memref<1x32x96xbf16, #tpu.memory_space<vmem>>, vector<1x32x96xbf16>
    %33 = vector.shape_cast %32 : vector<1x32x96xbf16> to vector<32x96xbf16>
    %cst_13 = arith.constant dense<0.000000e+00> : vector<8x96xf32>
    %34 = tpu.matmul %31, %33, %cst_13 {dimension_numbers = #tpu.dot_dimension_numbers<[1], [0], [0], [1], [0, 0, 1, 1], [], []>} : vector<8x32xbf16>, vector<32x96xbf16>, vector<8x96xf32> -> vector<8x96xf32>
    %35 = vector.extract_strided_slice %34 {offsets = [0, 0], sizes = [8, 32], strides = [1, 1]} : vector<8x96xf32> to vector<8x32xf32>
    %36 = vector.extract_strided_slice %6 {offsets = [2, 0], sizes = [1, 32], strides = [1, 1]} : vector<9x32xf32> to vector<1x32xf32>
    %37 = vector.broadcast %36 : vector<1x32xf32> to vector<8x32xf32>
    %38 = arith.addf %35, %37 : vector<8x32xf32>
    %cst_14 = arith.constant 0.353553385 : f32
    %39 = vector.broadcast %cst_14 : f32 to vector<8x32xf32>
    %40 = arith.mulf %38, %39 : vector<8x32xf32>
    %41 = vector.extract_strided_slice %34 {offsets = [0, 32], sizes = [8, 32], strides = [1, 1]} : vector<8x96xf32> to vector<8x32xf32>
    %42 = vector.extract_strided_slice %6 {offsets = [3, 0], sizes = [1, 32], strides = [1, 1]} : vector<9x32xf32> to vector<1x32xf32>
    %43 = vector.broadcast %42 : vector<1x32xf32> to vector<8x32xf32>
    %44 = arith.addf %41, %43 : vector<8x32xf32>
    %45 = vector.extract_strided_slice %34 {offsets = [0, 64], sizes = [8, 32], strides = [1, 1]} : vector<8x96xf32> to vector<8x32xf32>
    %46 = vector.extract_strided_slice %6 {offsets = [4, 0], sizes = [1, 32], strides = [1, 1]} : vector<9x32xf32> to vector<1x32xf32>
    %47 = vector.broadcast %46 : vector<1x32xf32> to vector<8x32xf32>
    %48 = arith.addf %45, %47 : vector<8x32xf32>
    %49 = vector.extract_strided_slice %40 {offsets = [0, 0], sizes = [8, 8], strides = [1, 1]} : vector<8x32xf32> to vector<8x8xf32>
    %50 = vector.extract_strided_slice %40 {offsets = [0, 8], sizes = [8, 8], strides = [1, 1]} : vector<8x32xf32> to vector<8x8xf32>
    %51 = vector.extract_strided_slice %40 {offsets = [0, 16], sizes = [8, 8], strides = [1, 1]} : vector<8x32xf32> to vector<8x8xf32>
    %52 = vector.extract_strided_slice %40 {offsets = [0, 24], sizes = [8, 8], strides = [1, 1]} : vector<8x32xf32> to vector<8x8xf32>
    %53 = vector.shape_cast %49 : vector<8x8xf32> to vector<1x8x8xf32>
    %54 = vector.shape_cast %50 : vector<8x8xf32> to vector<1x8x8xf32>
    %55 = vector.shape_cast %51 : vector<8x8xf32> to vector<1x8x8xf32>
    %56 = vector.shape_cast %52 : vector<8x8xf32> to vector<1x8x8xf32>
    %57 = tpu.concatenate %53, %54, %55, %56 in 0 : vector<1x8x8xf32>, vector<1x8x8xf32>, vector<1x8x8xf32>, vector<1x8x8xf32> -> vector<4x8x8xf32>
    %58 = vector.extract_strided_slice %44 {offsets = [0, 0], sizes = [8, 8], strides = [1, 1]} : vector<8x32xf32> to vector<8x8xf32>
    %59 = vector.extract_strided_slice %44 {offsets = [0, 8], sizes = [8, 8], strides = [1, 1]} : vector<8x32xf32> to vector<8x8xf32>
    %60 = vector.extract_strided_slice %44 {offsets = [0, 16], sizes = [8, 8], strides = [1, 1]} : vector<8x32xf32> to vector<8x8xf32>
    %61 = vector.extract_strided_slice %44 {offsets = [0, 24], sizes = [8, 8], strides = [1, 1]} : vector<8x32xf32> to vector<8x8xf32>
    %62 = vector.shape_cast %58 : vector<8x8xf32> to vector<1x8x8xf32>
    %63 = vector.shape_cast %59 : vector<8x8xf32> to vector<1x8x8xf32>
    %64 = vector.shape_cast %60 : vector<8x8xf32> to vector<1x8x8xf32>
    %65 = vector.shape_cast %61 : vector<8x8xf32> to vector<1x8x8xf32>
    %66 = tpu.concatenate %62, %63, %64, %65 in 0 : vector<1x8x8xf32>, vector<1x8x8xf32>, vector<1x8x8xf32>, vector<1x8x8xf32> -> vector<4x8x8xf32>
    %67 = vector.extract_strided_slice %48 {offsets = [0, 0], sizes = [8, 8], strides = [1, 1]} : vector<8x32xf32> to vector<8x8xf32>
    %68 = vector.extract_strided_slice %48 {offsets = [0, 8], sizes = [8, 8], strides = [1, 1]} : vector<8x32xf32> to vector<8x8xf32>
    %69 = vector.extract_strided_slice %48 {offsets = [0, 16], sizes = [8, 8], strides = [1, 1]} : vector<8x32xf32> to vector<8x8xf32>
    %70 = vector.extract_strided_slice %48 {offsets = [0, 24], sizes = [8, 8], strides = [1, 1]} : vector<8x32xf32> to vector<8x8xf32>
    %71 = vector.shape_cast %67 : vector<8x8xf32> to vector<1x8x8xf32>
    %72 = vector.shape_cast %68 : vector<8x8xf32> to vector<1x8x8xf32>
    %73 = vector.shape_cast %69 : vector<8x8xf32> to vector<1x8x8xf32>
    %74 = vector.shape_cast %70 : vector<8x8xf32> to vector<1x8x8xf32>
    %75 = tpu.concatenate %71, %72, %73, %74 in 0 : vector<1x8x8xf32>, vector<1x8x8xf32>, vector<1x8x8xf32>, vector<1x8x8xf32> -> vector<4x8x8xf32>
    %76 = arith.truncf %57 : vector<4x8x8xf32> to vector<4x8x8xbf16>
    %77 = arith.truncf %66 : vector<4x8x8xf32> to vector<4x8x8xbf16>
    "tpu.trace_start"() <{level = 10 : i32, message = "hqd,hkd->hqk"}> : () -> ()
    %cst_15 = arith.constant dense<0.000000e+00> : vector<4x8x8xf32>
    %78 = tpu.matmul %76, %77, %cst_15 {dimension_numbers = #tpu.dot_dimension_numbers<[2], [2], [1], [1], [0, 0, 0, 1, 1, 1], [0], [0]>} : vector<4x8x8xbf16>, vector<4x8x8xbf16>, vector<4x8x8xf32> -> vector<4x8x8xf32>
    "tpu.trace_stop"() : () -> ()
    %c0_16 = arith.constant 0 : index
    %c0_17 = arith.constant 0 : index
    %c0_18 = arith.constant 0 : index
    %79 = vector.load %arg3[%c0_16, %c0_17, %c0_18] : memref<1x1x8xf32, #tpu.memory_space<vmem>>, vector<1x1x8xf32>
    %80 = vector.broadcast %79 : vector<1x1x8xf32> to vector<4x8x8xf32>
    %81 = arith.addf %78, %80 : vector<4x8x8xf32>
    %cst_19 = arith.constant dense<0xFF800000> : vector<4x8xf32>
    %82 = vector.multi_reduction <maximumf>, %81, %cst_19 [2] : vector<4x8x8xf32> to vector<4x8xf32>
    %83 = vector.shape_cast %82 : vector<4x8xf32> to vector<4x8x1xf32>
    %84 = vector.broadcast %83 : vector<4x8x1xf32> to vector<4x8x8xf32>
    %85 = arith.subf %81, %84 : vector<4x8x8xf32>
    %86 = math.exp %85 : vector<4x8x8xf32>
    %cst_20 = arith.constant dense<0.000000e+00> : vector<4x8xf32>
    %87 = vector.multi_reduction <add>, %86, %cst_20 [2] : vector<4x8x8xf32> to vector<4x8xf32>
    %88 = vector.shape_cast %87 : vector<4x8xf32> to vector<4x8x1xf32>
    %89 = tpu.reciprocal %88 {approx = true} : vector<4x8x1xf32> -> vector<4x8x1xf32>
    %90 = vector.broadcast %89 : vector<4x8x1xf32> to vector<4x8x8xf32>
    %91 = arith.mulf %86, %90 : vector<4x8x8xf32>
    %92 = arith.truncf %91 : vector<4x8x8xf32> to vector<4x8x8xbf16>
    %93 = arith.truncf %75 : vector<4x8x8xf32> to vector<4x8x8xbf16>
    "tpu.trace_start"() <{level = 10 : i32, message = "hqk,hkd->hqd"}> : () -> ()
    %cst_21 = arith.constant dense<0.000000e+00> : vector<4x8x8xf32>
    %94 = tpu.matmul %92, %93, %cst_21 {dimension_numbers = #tpu.dot_dimension_numbers<[2], [1], [1], [2], [0, 0, 0, 1, 1, 2], [0], [0]>} : vector<4x8x8xbf16>, vector<4x8x8xbf16>, vector<4x8x8xf32> -> vector<4x8x8xf32>
    "tpu.trace_stop"() : () -> ()
    %95 = vector.extract_strided_slice %94 {offsets = [0, 0, 0], sizes = [1, 8, 8], strides = [1, 1, 1]} : vector<4x8x8xf32> to vector<1x8x8xf32>
    %96 = vector.shape_cast %95 : vector<1x8x8xf32> to vector<8x8xf32>
    %97 = vector.extract_strided_slice %94 {offsets = [1, 0, 0], sizes = [1, 8, 8], strides = [1, 1, 1]} : vector<4x8x8xf32> to vector<1x8x8xf32>
    %98 = vector.shape_cast %97 : vector<1x8x8xf32> to vector<8x8xf32>
    %99 = vector.extract_strided_slice %94 {offsets = [2, 0, 0], sizes = [1, 8, 8], strides = [1, 1, 1]} : vector<4x8x8xf32> to vector<1x8x8xf32>
    %100 = vector.shape_cast %99 : vector<1x8x8xf32> to vector<8x8xf32>
    %101 = vector.extract_strided_slice %94 {offsets = [3, 0, 0], sizes = [1, 8, 8], strides = [1, 1, 1]} : vector<4x8x8xf32> to vector<1x8x8xf32>
    %102 = vector.shape_cast %101 : vector<1x8x8xf32> to vector<8x8xf32>
    %103 = tpu.concatenate %96, %98, %100, %102 in 1 : vector<8x8xf32>, vector<8x8xf32>, vector<8x8xf32>, vector<8x8xf32> -> vector<8x32xf32>
    %104 = arith.truncf %103 : vector<8x32xf32> to vector<8x32xbf16>
    %c0_22 = arith.constant 0 : index
    %c0_23 = arith.constant 0 : index
    %c0_24 = arith.constant 0 : index
    %105 = vector.load %arg5[%c0_22, %c0_23, %c0_24] : memref<1x32x32xbf16, #tpu.memory_space<vmem>>, vector<1x32x32xbf16>
    %106 = vector.shape_cast %105 : vector<1x32x32xbf16> to vector<32x32xbf16>
    %cst_25 = arith.constant dense<0.000000e+00> : vector<8x32xf32>
    %107 = tpu.matmul %104, %106, %cst_25 {dimension_numbers = #tpu.dot_dimension_numbers<[1], [0], [0], [1], [0, 0, 1, 1], [], []>} : vector<8x32xbf16>, vector<32x32xbf16>, vector<8x32xf32> -> vector<8x32xf32>
    %108 = vector.extract_strided_slice %6 {offsets = [5, 0], sizes = [1, 32], strides = [1, 1]} : vector<9x32xf32> to vector<1x32xf32>
    %109 = vector.broadcast %108 : vector<1x32xf32> to vector<8x32xf32>
    %110 = arith.addf %107, %109 : vector<8x32xf32>
    %111 = arith.addf %4, %110 : vector<8x32xf32>
    %112 = vector.extract_strided_slice %6 {offsets = [6, 0], sizes = [1, 32], strides = [1, 1]} : vector<9x32xf32> to vector<1x32xf32>
    %113 = vector.extract_strided_slice %6 {offsets = [7, 0], sizes = [1, 32], strides = [1, 1]} : vector<9x32xf32> to vector<1x32xf32>
    %cst_26 = arith.constant dense<0.000000e+00> : vector<8xf32>
    %114 = vector.multi_reduction <add>, %111, %cst_26 [1] : vector<8x32xf32> to vector<8xf32>
    %115 = vector.shape_cast %114 : vector<8xf32> to vector<8x1xf32>
    %cst_27 = arith.constant 3.200000e+01 : f32
    %116 = vector.broadcast %cst_27 : f32 to vector<8x1xf32>
    %117 = arith.divf %115, %116 : vector<8x1xf32>
    %118 = vector.broadcast %117 : vector<8x1xf32> to vector<8x32xf32>
    %119 = arith.subf %111, %118 : vector<8x32xf32>
    %120 = arith.mulf %119, %119 : vector<8x32xf32>
    %cst_28 = arith.constant dense<0.000000e+00> : vector<8xf32>
    %121 = vector.multi_reduction <add>, %120, %cst_28 [1] : vector<8x32xf32> to vector<8xf32>
    %122 = vector.shape_cast %121 : vector<8xf32> to vector<8x1xf32>
    %cst_29 = arith.constant 3.200000e+01 : f32
    %123 = vector.broadcast %cst_29 : f32 to vector<8x1xf32>
    %124 = arith.divf %122, %123 : vector<8x1xf32>
    %125 = vector.broadcast %117 : vector<8x1xf32> to vector<8x32xf32>
    %126 = arith.subf %111, %125 : vector<8x32xf32>
    %cst_30 = arith.constant 9.99999974E-6 : f32
    %127 = vector.broadcast %cst_30 : f32 to vector<8x1xf32>
    %128 = arith.addf %124, %127 : vector<8x1xf32>
    %129 = math.rsqrt %128 : vector<8x1xf32>
    %130 = vector.broadcast %129 : vector<8x1xf32> to vector<8x32xf32>
    %131 = arith.mulf %126, %130 : vector<8x32xf32>
    %132 = vector.broadcast %112 : vector<1x32xf32> to vector<8x32xf32>
    %133 = arith.mulf %131, %132 : vector<8x32xf32>
    %134 = vector.broadcast %113 : vector<1x32xf32> to vector<8x32xf32>
    %135 = arith.addf %133, %134 : vector<8x32xf32>
    %136 = arith.truncf %135 : vector<8x32xf32> to vector<8x32xbf16>
    %c0_31 = arith.constant 0 : index
    %c0_32 = arith.constant 0 : index
    %c0_33 = arith.constant 0 : index
    %137 = vector.load %arg6[%c0_31, %c0_32, %c0_33] : memref<1x32x128xbf16, #tpu.memory_space<vmem>>, vector<1x32x128xbf16>
    %138 = vector.shape_cast %137 : vector<1x32x128xbf16> to vector<32x128xbf16>
    %cst_34 = arith.constant dense<0.000000e+00> : vector<8x128xf32>
    %139 = tpu.matmul %136, %138, %cst_34 {dimension_numbers = #tpu.dot_dimension_numbers<[1], [0], [0], [1], [0, 0, 1, 1], [], []>} : vector<8x32xbf16>, vector<32x128xbf16>, vector<8x128xf32> -> vector<8x128xf32>
    %c0_35 = arith.constant 0 : index
    %c0_36 = arith.constant 0 : index
    %c0_37 = arith.constant 0 : index
    %140 = vector.load %arg9[%c0_35, %c0_36, %c0_37] : memref<1x1x128xf32, #tpu.memory_space<vmem>>, vector<1x1x128xf32>
    %141 = vector.shape_cast %140 : vector<1x1x128xf32> to vector<1x128xf32>
    %142 = vector.broadcast %141 : vector<1x128xf32> to vector<8x128xf32>
    %143 = arith.addf %139, %142 : vector<8x128xf32>
    %cst_38 = arith.constant 5.000000e-01 : f32
    %144 = vector.broadcast %cst_38 : f32 to vector<8x128xf32>
    %145 = arith.mulf %143, %144 : vector<8x128xf32>
    %cst_39 = arith.constant 2.000000e+00 : f32
    %146 = math.sqrt %cst_39 : f32
    %147 = vector.broadcast %146 : f32 to vector<8x128xf32>
    %148 = arith.divf %143, %147 : vector<8x128xf32>
    %149 = math.erf %148 : vector<8x128xf32>
    %cst_40 = arith.constant 1.000000e+00 : f32
    %150 = vector.broadcast %cst_40 : f32 to vector<8x128xf32>
    %151 = arith.addf %150, %149 : vector<8x128xf32>
    %152 = arith.mulf %145, %151 : vector<8x128xf32>
    %153 = arith.truncf %152 : vector<8x128xf32> to vector<8x128xbf16>
    %c0_41 = arith.constant 0 : index
    %c0_42 = arith.constant 0 : index
    %c0_43 = arith.constant 0 : index
    %154 = vector.load %arg7[%c0_41, %c0_42, %c0_43] : memref<1x128x32xbf16, #tpu.memory_space<vmem>>, vector<1x128x32xbf16>
    %155 = vector.shape_cast %154 : vector<1x128x32xbf16> to vector<128x32xbf16>
    %cst_44 = arith.constant dense<0.000000e+00> : vector<8x32xf32>
    %156 = tpu.matmul %153, %155, %cst_44 {dimension_numbers = #tpu.dot_dimension_numbers<[1], [0], [0], [1], [0, 0, 1, 1], [], []>} : vector<8x128xbf16>, vector<128x32xbf16>, vector<8x32xf32> -> vector<8x32xf32>
    %157 = vector.extract_strided_slice %6 {offsets = [8, 0], sizes = [1, 32], strides = [1, 1]} : vector<9x32xf32> to vector<1x32xf32>
    %158 = vector.broadcast %157 : vector<1x32xf32> to vector<8x32xf32>
    %159 = arith.addf %156, %158 : vector<8x32xf32>
    %160 = arith.addf %111, %159 : vector<8x32xf32>
    %c0_45 = arith.constant 0 : index
    %c0_46 = arith.constant 0 : index
    %c0_47 = arith.constant 0 : index
    %161 = vector.load %arg10[%c0_45, %c0_46, %c0_47] : memref<1x8x32xf32, #tpu.memory_space<vmem>>, vector<1x8x32xf32>
    %162 = vector.shape_cast %161 : vector<1x8x32xf32> to vector<8x32xf32>
    %163 = vector.shape_cast %160 : vector<8x32xf32> to vector<1x8x32xf32>
    tpu.vector_store %arg10[%c0_45, %c0_46, %c0_47], %163 {strides = array<i32>} : memref<1x8x32xf32, #tpu.memory_space<vmem>>, vector<1x8x32xf32>,
    return
  }
  func.func @transform_0(%arg0: i32, %arg1: i32) -> (i32, i32, i32) {
    %c0_i32 = arith.constant 0 : i32
    %c0_i32_0 = arith.constant 0 : i32
    %c0_i32_1 = arith.constant 0 : i32
    return %arg0, %c0_i32, %c0_i32_0 : i32, i32, i32
  }
  func.func @transform_1(%arg0: i32, %arg1: i32) -> (i32, i32, i32) {
    %c0_i32 = arith.constant 0 : i32
    %c0_i32_0 = arith.constant 0 : i32
    %c0_i32_1 = arith.constant 0 : i32
    return %arg0, %c0_i32, %c0_i32_0 : i32, i32, i32
  }
  func.func @transform_2(%arg0: i32, %arg1: i32) -> (i32, i32, i32) {
    %c0_i32 = arith.constant 0 : i32
    %c0_i32_0 = arith.constant 0 : i32
    %c0_i32_1 = arith.constant 0 : i32
    return %arg1, %c0_i32, %c0_i32_0 : i32, i32, i32
  }
  func.func @transform_3(%arg0: i32, %arg1: i32) -> (i32, i32, i32) {
    %c0_i32 = arith.constant 0 : i32
    %c0_i32_0 = arith.constant 0 : i32
    %c0_i32_1 = arith.constant 0 : i32
    return %arg1, %c0_i32, %c0_i32_0 : i32, i32, i32
  }
  func.func @transform_4(%arg0: i32, %arg1: i32) -> (i32, i32, i32) {
    %c0_i32 = arith.constant 0 : i32
    %c0_i32_0 = arith.constant 0 : i32
    %c0_i32_1 = arith.constant 0 : i32
    return %arg1, %c0_i32, %c0_i32_0 : i32, i32, i32
  }
  func.func @transform_5(%arg0: i32, %arg1: i32) -> (i32, i32, i32) {
    %c0_i32 = arith.constant 0 : i32
    %c0_i32_0 = arith.constant 0 : i32
    %c0_i32_1 = arith.constant 0 : i32
    return %arg1, %c0_i32, %c0_i32_0 : i32, i32, i32
  }
  func.func @transform_6(%arg0: i32, %arg1: i32) -> (i32, i32, i32) {
    %c0_i32 = arith.constant 0 : i32
    %c0_i32_0 = arith.constant 0 : i32
    %c0_i32_1 = arith.constant 0 : i32
    return %arg1, %c0_i32, %c0_i32_0 : i32, i32, i32
  }
  func.func @transform_7(%arg0: i32, %arg1: i32) -> (i32, i32, i32) {
    %c0_i32 = arith.constant 0 : i32
    %c0_i32_0 = arith.constant 0 : i32
    %c0_i32_1 = arith.constant 0 : i32
    return %arg1, %c0_i32, %c0_i32_0 : i32, i32, i32
  }
  func.func @transform_8(%arg0: i32, %arg1: i32) -> (i32, i32, i32) {
    %c0_i32 = arith.constant 0 : i32
    %c0_i32_0 = arith.constant 0 : i32
    %c0_i32_1 = arith.constant 0 : i32
    return %arg0, %c0_i32, %c0_i32_0 : i32, i32, i32
  }
}

</mosaic_0001>

<llo_original>
// kernel: tpu_custom_call.1
$region0: #{tpu_custom_call.1}
  #allocation0 [shape = 'u32[]', space=smem, size = 0x4, offset = 0x4, fixed_abs, tag = 'smem constant byte address 0x4 - core index']
  #allocation1 [shape = 'u32[72,128]{1,0:T(1,128)}', space=vmem, size = 0x9000, scoped, tag = 'internal scratch']
  %s0 = inlined_call_operand.vmem [shape: f32[2,8,32], index: 0, kind: input, shape index: {}]
  %s1 = inlined_call_operand.vmem [shape: f32[2,1,8], index: 1, kind: input, shape index: {}]
  %s2 = inlined_call_operand.vmem [shape: bf16[2,32,96], index: 2, kind: input, shape index: {}]
  %s3 = inlined_call_operand.vmem [shape: bf16[2,32,32], index: 3, kind: input, shape index: {}]
  %s4 = inlined_call_operand.vmem [shape: bf16[2,32,128], index: 4, kind: input, shape index: {}]
  %s5 = inlined_call_operand.vmem [shape: bf16[2,128,32], index: 5, kind: input, shape index: {}]
  %s6 = inlined_call_operand.vmem [shape: f32[2,9,32], index: 6, kind: input, shape index: {}]
  %s7 = inlined_call_operand.vmem [shape: f32[2,1,128], index: 7, kind: input, shape index: {}]
  %s8 = inlined_call_operand.hbm [shape: f32[2,8,32], index: 8, kind: output, shape index: {}]
  %s9 = sld [smem:[#allocation0]]
  $region69: #{tpu_custom_call.1} parent=0
    _
  %s11 = ssub.s32 1, %s9
  %s12 = scalar_select 0, %s11, %s9
  $region1: #{tpu_custom_call.1} parent=0
    #allocation2 [shape = 'u8[8192]{0}', space=vmem, size = 0x2000, scoped, tag = 'output window, operand 0']
    #allocation3 [shape = 's32[2]{0}', space=sflag, size = 0x8, scoped, tag = 'scoped memory for tpu_custom_call.1']
    %13 = vsyncpa [#allocation3], 0
    %s14 = scalar_lea.sflag [#allocation3], 1
    %15 = vsyncpa %s14, 0
    loop: start=0, step=1, limit=6
    $region2: #{tpu_custom_call.1} parent=1 // loop_pre_header
      _
    $region3: #{tpu_custom_call.1} parent=1 // loop_header
      %s17 = sphi 0, %s21
      %p18 = scmp.ge.s32.totalorder %s17, 6
      %s24 = sphi 0, %s36
      %s25 = sphi 0, %s32
      %s26 = sphi 0, %s24
      %s27 = sphi 0, %s25
      %s28 = sphi 0, %s26
      %s29 = sphi 0, %s27
      %s39 = sphi 0, %s41
      %s42 = sphi 0, %s39
      %s43 = sphi 0, %s42
      %s59 = sphi 0, %s43
      %s65 = sphi 0, %s67
      %s68 = sphi 0, %s65
      %s69 = sphi 0, %s68
      %s85 = sphi 0, %s69
      %s91 = sphi 0, %s93
      %s94 = sphi 0, %s91
      %s95 = sphi 0, %s94
      %s111 = sphi 0, %s95
      %s117 = sphi 0, %s119
      %s120 = sphi 0, %s117
      %s121 = sphi 0, %s120
      %s137 = sphi 0, %s121
      %s143 = sphi 0, %s145
      %s146 = sphi 0, %s143
      %s147 = sphi 0, %s146
      %s163 = sphi 0, %s147
      %s169 = sphi 0, %s171
      %s172 = sphi 0, %s169
      %s173 = sphi 0, %s172
      %s189 = sphi 0, %s173
      %s195 = sphi 0, %s197
      %s198 = sphi 0, %s195
      %s199 = sphi 0, %s198
      %s215 = sphi 0, %s199
      %s221 = sphi 0, %s223
      %s224 = sphi 0, %s221
      %s225 = sphi 0, %s224
      %s241 = sphi 0, %s225
      %s247 = sphi 0, %s249
      %s250 = sphi 0, %s247
      %s251 = sphi 0, %s250
      %s267 = sphi 0, %s251
    $region4: #{tpu_custom_call.1} parent=1 // loop_header_branch
      %20 = sbr.rel (%p18) target = $region8
    $region5: #{tpu_custom_call.1} parent=1 // loop_body
      %s22 = ssub.s32 %s17, 1
      %s23 = ssub.s32 %s17, 2
      %s30 = sadd.s32 1, %s25
      %p31 = scmp.ge.s32.totalorder %s30, 2
      %s32 = scalar_select %p31, 0, %s30
      %s33 = sadd.s32 1, %s24
      %s34 = scalar_select %p31, %s33, %s24
      %p35 = scmp.ge.s32.totalorder %s34, 2
      %s36 = scalar_select %p35, 0, %s34
      %s37 = ssub.s32 %s24, %s36
      %p38 = scmp.eq.s32.totalorder %s37, 0
      %s40 = sadd.s32 %s39, 1
      %s41 = scalar_select %p38, %s39, %s40
      %p44 = pneg %p38
      %p45 = scmp.eq.s32.totalorder %s17, 3
      %p46 = por %p44, %p45
      %p47 = scmp.ne.s32.totalorder %s39, %s42
      %p48 = scmp.eq.s32.totalorder %s17, 0
      %p49 = por %p47, %p48
      %p50 = scmp.ne.s32.totalorder %s39, %s42
      %p51 = scmp.eq.s32.totalorder %s22, 3
      %p52 = por %p50, %p51
      %p53 = scmp.ne.s32.totalorder %s42, %s43
      %p54 = scmp.eq.s32.totalorder %s22, 0
      %p55 = por %p53, %p54
      %p56 = scmp.ne.s32.totalorder %s42, %s43
      %p57 = scmp.eq.s32.totalorder %s23, 3
      %p58 = por %p56, %p57
      %p60 = scmp.ne.s32.totalorder %s43, %s59
      %p61 = scmp.eq.s32.totalorder %s23, 0
      %p62 = por %p60, %p61
      %s63 = ssub.s32 %s24, %s36
      %p64 = scmp.eq.s32.totalorder %s63, 0
      %s66 = sadd.s32 %s65, 1
      %s67 = scalar_select %p64, %s65, %s66
      %p70 = pneg %p64
      %p71 = scmp.eq.s32.totalorder %s17, 3
      %p72 = por %p70, %p71
      %p73 = scmp.ne.s32.totalorder %s65, %s68
      %p74 = scmp.eq.s32.totalorder %s17, 0
      %p75 = por %p73, %p74
      %p76 = scmp.ne.s32.totalorder %s65, %s68
      %p77 = scmp.eq.s32.totalorder %s22, 3
      %p78 = por %p76, %p77
      %p79 = scmp.ne.s32.totalorder %s68, %s69
      %p80 = scmp.eq.s32.totalorder %s22, 0
      %p81 = por %p79, %p80
      %p82 = scmp.ne.s32.totalorder %s68, %s69
      %p83 = scmp.eq.s32.totalorder %s23, 3
      %p84 = por %p82, %p83
      %p86 = scmp.ne.s32.totalorder %s69, %s85
      %p87 = scmp.eq.s32.totalorder %s23, 0
      %p88 = por %p86, %p87
      %s89 = ssub.s32 %s25, %s32
      %p90 = scmp.eq.s32.totalorder %s89, 0
      %s92 = sadd.s32 %s91, 1
      %s93 = scalar_select %p90, %s91, %s92
      %p96 = pneg %p90
      %p97 = scmp.eq.s32.totalorder %s17, 3
      %p98 = por %p96, %p97
      %p99 = scmp.ne.s32.totalorder %s91, %s94
      %p100 = scmp.eq.s32.totalorder %s17, 0
      %p101 = por %p99, %p100
      %p102 = scmp.ne.s32.totalorder %s91, %s94
      %p103 = scmp.eq.s32.totalorder %s22, 3
      %p104 = por %p102, %p103
      %p105 = scmp.ne.s32.totalorder %s94, %s95
      %p106 = scmp.eq.s32.totalorder %s22, 0
      %p107 = por %p105, %p106
      %p108 = scmp.ne.s32.totalorder %s94, %s95
      %p109 = scmp.eq.s32.totalorder %s23, 3
      %p110 = por %p108, %p109
      %p112 = scmp.ne.s32.totalorder %s95, %s111
      %p113 = scmp.eq.s32.totalorder %s23, 0
      %p114 = por %p112, %p113
      %s115 = ssub.s32 %s25, %s32
      %p116 = scmp.eq.s32.totalorder %s115, 0
      %s118 = sadd.s32 %s117, 1
      %s119 = scalar_select %p116, %s117, %s118
      %p122 = pneg %p116
      %p123 = scmp.eq.s32.totalorder %s17, 3
      %p124 = por %p122, %p123
      %p125 = scmp.ne.s32.totalorder %s117, %s120
      %p126 = scmp.eq.s32.totalorder %s17, 0
      %p127 = por %p125, %p126
      %p128 = scmp.ne.s32.totalorder %s117, %s120
      %p129 = scmp.eq.s32.totalorder %s22, 3
      %p130 = por %p128, %p129
      %p131 = scmp.ne.s32.totalorder %s120, %s121
      %p132 = scmp.eq.s32.totalorder %s22, 0
      %p133 = por %p131, %p132
      %p134 = scmp.ne.s32.totalorder %s120, %s121
      %p135 = scmp.eq.s32.totalorder %s23, 3
      %p136 = por %p134, %p135
      %p138 = scmp.ne.s32.totalorder %s121, %s137
      %p139 = scmp.eq.s32.totalorder %s23, 0
      %p140 = por %p138, %p139
      %s141 = ssub.s32 %s25, %s32
      %p142 = scmp.eq.s32.totalorder %s141, 0
      %s144 = sadd.s32 %s143, 1
      %s145 = scalar_select %p142, %s143, %s144
      %p148 = pneg %p142
      %p149 = scmp.eq.s32.totalorder %s17, 3
      %p150 = por %p148, %p149
      %p151 = scmp.ne.s32.totalorder %s143, %s146
      %p152 = scmp.eq.s32.totalorder %s17, 0
      %p153 = por %p151, %p152
      %p154 = scmp.ne.s32.totalorder %s143, %s146
      %p155 = scmp.eq.s32.totalorder %s22, 3
      %p156 = por %p154, %p155
      %p157 = scmp.ne.s32.totalorder %s146, %s147
      %p158 = scmp.eq.s32.totalorder %s22, 0
      %p159 = por %p157, %p158
      %p160 = scmp.ne.s32.totalorder %s146, %s147
      %p161 = scmp.eq.s32.totalorder %s23, 3
      %p162 = por %p160, %p161
      %p164 = scmp.ne.s32.totalorder %s147, %s163
      %p165 = scmp.eq.s32.totalorder %s23, 0
      %p166 = por %p164, %p165
      %s167 = ssub.s32 %s25, %s32
      %p168 = scmp.eq.s32.totalorder %s167, 0
      %s170 = sadd.s32 %s169, 1
      %s171 = scalar_select %p168, %s169, %s170
      %p174 = pneg %p168
      %p175 = scmp.eq.s32.totalorder %s17, 3
      %p176 = por %p174, %p175
      %p177 = scmp.ne.s32.totalorder %s169, %s172
      %p178 = scmp.eq.s32.totalorder %s17, 0
      %p179 = por %p177, %p178
      %p180 = scmp.ne.s32.totalorder %s169, %s172
      %p181 = scmp.eq.s32.totalorder %s22, 3
      %p182 = por %p180, %p181
      %p183 = scmp.ne.s32.totalorder %s172, %s173
      %p184 = scmp.eq.s32.totalorder %s22, 0
      %p185 = por %p183, %p184
      %p186 = scmp.ne.s32.totalorder %s172, %s173
      %p187 = scmp.eq.s32.totalorder %s23, 3
      %p188 = por %p186, %p187
      %p190 = scmp.ne.s32.totalorder %s173, %s189
      %p191 = scmp.eq.s32.totalorder %s23, 0
      %p192 = por %p190, %p191
      %s193 = ssub.s32 %s25, %s32
      %p194 = scmp.eq.s32.totalorder %s193, 0
      %s196 = sadd.s32 %s195, 1
      %s197 = scalar_select %p194, %s195, %s196
      %p200 = pneg %p194
      %p201 = scmp.eq.s32.totalorder %s17, 3
      %p202 = por %p200, %p201
      %p203 = scmp.ne.s32.totalorder %s195, %s198
      %p204 = scmp.eq.s32.totalorder %s17, 0
      %p205 = por %p203, %p204
      %p206 = scmp.ne.s32.totalorder %s195, %s198
      %p207 = scmp.eq.s32.totalorder %s22, 3
      %p208 = por %p206, %p207
      %p209 = scmp.ne.s32.totalorder %s198, %s199
      %p210 = scmp.eq.s32.totalorder %s22, 0
      %p211 = por %p209, %p210
      %p212 = scmp.ne.s32.totalorder %s198, %s199
      %p213 = scmp.eq.s32.totalorder %s23, 3
      %p214 = por %p212, %p213
      %p216 = scmp.ne.s32.totalorder %s199, %s215
      %p217 = scmp.eq.s32.totalorder %s23, 0
      %p218 = por %p216, %p217
      %s219 = ssub.s32 %s25, %s32
      %p220 = scmp.eq.s32.totalorder %s219, 0
      %s222 = sadd.s32 %s221, 1
      %s223 = scalar_select %p220, %s221, %s222
      %p226 = pneg %p220
      %p227 = scmp.eq.s32.totalorder %s17, 3
      %p228 = por %p226, %p227
      %p229 = scmp.ne.s32.totalorder %s221, %s224
      %p230 = scmp.eq.s32.totalorder %s17, 0
      %p231 = por %p229, %p230
      %p232 = scmp.ne.s32.totalorder %s221, %s224
      %p233 = scmp.eq.s32.totalorder %s22, 3
      %p234 = por %p232, %p233
      %p235 = scmp.ne.s32.totalorder %s224, %s225
      %p236 = scmp.eq.s32.totalorder %s22, 0
      %p237 = por %p235, %p236
      %p238 = scmp.ne.s32.totalorder %s224, %s225
      %p239 = scmp.eq.s32.totalorder %s23, 3
      %p240 = por %p238, %p239
      %p242 = scmp.ne.s32.totalorder %s225, %s241
      %p243 = scmp.eq.s32.totalorder %s23, 0
      %p244 = por %p242, %p243
      %s245 = ssub.s32 %s24, %s36
      %p246 = scmp.eq.s32.totalorder %s245, 0
      %s248 = sadd.s32 %s247, 1
      %s249 = scalar_select %p246, %s247, %s248
      %p252 = pneg %p246
      %p253 = scmp.eq.s32.totalorder %s17, 3
      %p254 = por %p252, %p253
      %p255 = scmp.ne.s32.totalorder %s247, %s250
      %p256 = scmp.eq.s32.totalorder %s17, 0
      %p257 = por %p255, %p256
      %p258 = scmp.ne.s32.totalorder %s247, %s250
      %p259 = scmp.eq.s32.totalorder %s22, 3
      %p260 = por %p258, %p259
      %p261 = scmp.ne.s32.totalorder %s250, %s251
      %p262 = scmp.eq.s32.totalorder %s22, 0
      %p263 = por %p261, %p262
      %p264 = scmp.ne.s32.totalorder %s250, %s251
      %p265 = scmp.eq.s32.totalorder %s23, 3
      %p266 = por %p264, %p265
      %p268 = scmp.ne.s32.totalorder %s251, %s267
      %p269 = scmp.eq.s32.totalorder %s23, 0
      %p270 = por %p268, %p269
      %p271 = scmp.le.s32.totalorder 1, %s17
      %p272 = scmp.lt.s32.totalorder %s17, 5
      %p273 = pnand %p271, %p272
      %p274 = pneg %p273
      // Predicated region
      $region9: #{tpu_custom_call.1} parent=5 // pred_check
        _
      $region10: #{tpu_custom_call.1} parent=5 // pred_check_branch
        %276 = sbr.rel (%p273) target = $region12
      $region11: #{tpu_custom_call.1} parent=5 // pred_region
        %s277 = ssub.s32 %s17, 1
      $region12: #{tpu_custom_call.1} parent=5 // pred_fallthru
        _
      %p278 = scmp.lt.s32.totalorder %s17, 4
      // Predicated region
      $region13: #{tpu_custom_call.1} parent=5 // pred_check
        %p279 = pneg %p278
      $region14: #{tpu_custom_call.1} parent=5 // pred_check_branch
        %281 = sbr.rel (%p279) target = $region16
      $region15: #{tpu_custom_call.1} parent=5 // pred_region
        // Predicated region
        $region17: #{tpu_custom_call.1} parent=15 // pred_check
          %p282 = pneg %p49
        $region18: #{tpu_custom_call.1} parent=15 // pred_check_branch
          %284 = sbr.rel (%p282) target = $region20
        $region19: #{tpu_custom_call.1} parent=15 // pred_region
          %p285 = scmp.lt.s32.totalorder %s24, 1
          %s286 = scalar_select %p285, %s24, 1
          %s287 = smul.addr %s286, 8
          %s288 = scalar_lea.vmem %s0, %s287
        $region20: #{tpu_custom_call.1} parent=15 // pred_fallthru
          _
        // Predicated region
        $region21: #{tpu_custom_call.1} parent=15 // pred_check
          %p289 = pneg %p75
        $region22: #{tpu_custom_call.1} parent=15 // pred_check_branch
          %291 = sbr.rel (%p289) target = $region24
        $region23: #{tpu_custom_call.1} parent=15 // pred_region
          %p292 = scmp.lt.s32.totalorder %s24, 1
          %s293 = scalar_select %p292, %s24, 1
          %s294 = scalar_lea.vmem %s1, %s293
        $region24: #{tpu_custom_call.1} parent=15 // pred_fallthru
          _
        // Predicated region
        $region25: #{tpu_custom_call.1} parent=15 // pred_check
          %p295 = pneg %p101
        $region26: #{tpu_custom_call.1} parent=15 // pred_check_branch
          %297 = sbr.rel (%p295) target = $region28
        $region27: #{tpu_custom_call.1} parent=15 // pred_region
          %p298 = scmp.lt.s32.totalorder %s25, 1
          %s299 = scalar_select %p298, %s25, 1
          %s300 = smul.addr %s299, 4
          %s301 = smul.addr %s300, 4
          %s302 = scalar_lea.vmem %s2, %s301
        $region28: #{tpu_custom_call.1} parent=15 // pred_fallthru
          _
        // Predicated region
        $region29: #{tpu_custom_call.1} parent=15 // pred_check
          %p303 = pneg %p127
        $region30: #{tpu_custom_call.1} parent=15 // pred_check_branch
          %305 = sbr.rel (%p303) target = $region32
        $region31: #{tpu_custom_call.1} parent=15 // pred_region
          %p306 = scmp.lt.s32.totalorder %s25, 1
          %s307 = scalar_select %p306, %s25, 1
          %s308 = smul.addr %s307, 4
          %s309 = smul.addr %s308, 4
          %s310 = scalar_lea.vmem %s3, %s309
        $region32: #{tpu_custom_call.1} parent=15 // pred_fallthru
          _
        // Predicated region
        $region33: #{tpu_custom_call.1} parent=15 // pred_check
          %p311 = pneg %p153
        $region34: #{tpu_custom_call.1} parent=15 // pred_check_branch
          %313 = sbr.rel (%p311) target = $region36
        $region35: #{tpu_custom_call.1} parent=15 // pred_region
          %p314 = scmp.lt.s32.totalorder %s25, 1
          %s315 = scalar_select %p314, %s25, 1
          %s316 = smul.addr %s315, 4
          %s317 = smul.addr %s316, 4
          %s318 = scalar_lea.vmem %s4, %s317
        $region36: #{tpu_custom_call.1} parent=15 // pred_fallthru
          _
        // Predicated region
        $region37: #{tpu_custom_call.1} parent=15 // pred_check
          %p319 = pneg %p179
        $region38: #{tpu_custom_call.1} parent=15 // pred_check_branch
          %321 = sbr.rel (%p319) target = $region40
        $region39: #{tpu_custom_call.1} parent=15 // pred_region
          %p322 = scmp.lt.s32.totalorder %s25, 1
          %s323 = scalar_select %p322, %s25, 1
          %s324 = smul.addr %s323, 16
          %s325 = smul.addr %s324, 4
          %s326 = scalar_lea.vmem %s5, %s325
        $region40: #{tpu_custom_call.1} parent=15 // pred_fallthru
          _
        // Predicated region
        $region41: #{tpu_custom_call.1} parent=15 // pred_check
          %p327 = pneg %p205
        $region42: #{tpu_custom_call.1} parent=15 // pred_check_branch
          %329 = sbr.rel (%p327) target = $region44
        $region43: #{tpu_custom_call.1} parent=15 // pred_region
          %p330 = scmp.lt.s32.totalorder %s25, 1
          %s331 = scalar_select %p330, %s25, 1
          %s332 = smul.addr %s331, 2
          %s333 = smul.addr %s332, 8
          %s334 = scalar_lea.vmem %s6, %s333
        $region44: #{tpu_custom_call.1} parent=15 // pred_fallthru
          _
        // Predicated region
        $region45: #{tpu_custom_call.1} parent=15 // pred_check
          %p335 = pneg %p231
        $region46: #{tpu_custom_call.1} parent=15 // pred_check_branch
          %337 = sbr.rel (%p335) target = $region48
        $region47: #{tpu_custom_call.1} parent=15 // pred_region
          %p338 = scmp.lt.s32.totalorder %s25, 1
          %s339 = scalar_select %p338, %s25, 1
          %s340 = scalar_lea.vmem %s7, %s339
        $region48: #{tpu_custom_call.1} parent=15 // pred_fallthru
          _
      $region16: #{tpu_custom_call.1} parent=5 // pred_fallthru
        _
      %p341 = scmp.le.s32.totalorder 1, %s17
      %p342 = scmp.lt.s32.totalorder %s17, 5
      %p343 = pnand %p341, %p342
      %p344 = pneg %p343
      // Predicated region
      $region49: #{tpu_custom_call.1} parent=5 // pred_check
        _
      $region50: #{tpu_custom_call.1} parent=5 // pred_check_branch
        %346 = sbr.rel (%p343) target = $region52
      $region51: #{tpu_custom_call.1} parent=5 // pred_region
        %s347 = ssub.s32 %s17, 1
        %p348 = scmp.lt.s32.totalorder %s26, 1
        %s349 = scalar_select %p348, %s26, 1
        %s350 = smul.addr %s349, 8
        %s351 = scalar_lea.vmem %s0, %s350
        %p352 = pneg %p55
        %p353 = pneg %p52
        %p354 = scmp.lt.s32.totalorder %s26, 1
        %s355 = scalar_select %p354, %s26, 1
        %s356 = scalar_lea.vmem %s1, %s355
        %p357 = pneg %p81
        %p358 = pneg %p78
        %p359 = scmp.lt.s32.totalorder %s27, 1
        %s360 = scalar_select %p359, %s27, 1
        %s361 = smul.addr %s360, 4
        %s362 = smul.addr %s361, 4
        %s363 = scalar_lea.vmem %s2, %s362
        %p364 = pneg %p107
        %p365 = pneg %p104
        %p366 = scmp.lt.s32.totalorder %s27, 1
        %s367 = scalar_select %p366, %s27, 1
        %s368 = smul.addr %s367, 4
        %s369 = smul.addr %s368, 4
        %s370 = scalar_lea.vmem %s3, %s369
        %p371 = pneg %p133
        %p372 = pneg %p130
        %p373 = scmp.lt.s32.totalorder %s27, 1
        %s374 = scalar_select %p373, %s27, 1
        %s375 = smul.addr %s374, 4
        %s376 = smul.addr %s375, 4
        %s377 = scalar_lea.vmem %s4, %s376
        %p378 = pneg %p159
        %p379 = pneg %p156
        %p380 = scmp.lt.s32.totalorder %s27, 1
        %s381 = scalar_select %p380, %s27, 1
        %s382 = smul.addr %s381, 16
        %s383 = smul.addr %s382, 4
        %s384 = scalar_lea.vmem %s5, %s383
        %p385 = pneg %p185
        %p386 = pneg %p182
        %p387 = scmp.lt.s32.totalorder %s27, 1
        %s388 = scalar_select %p387, %s27, 1
        %s389 = smul.addr %s388, 2
        %s390 = smul.addr %s389, 8
        %s391 = scalar_lea.vmem %s6, %s390
        %p392 = pneg %p211
        %p393 = pneg %p208
        %p394 = scmp.lt.s32.totalorder %s27, 1
        %s395 = scalar_select %p394, %s27, 1
        %s396 = scalar_lea.vmem %s7, %s395
        %p397 = pneg %p237
        %p398 = pneg %p234
        %p399 = pneg %p263
        %p400 = pneg %p260
        %s401 = sand.u32 %s250, 1
        %s402 = scalar_lea.sflag [#allocation3], %s401
        %s403 = sand.u32 %s250, 1
        %s404 = smul.addr %s403, 8
        %s405 = scalar_lea.vmem [#allocation2], %s404
        %p406 = scmp.lt.s32.totalorder %s26, 1
        %s407 = scalar_select %p406, %s26, 1
        %s408 = smul.addr %s407, 8
        %s409 = scalar_lea.vmem %s0, %s408
        %p410 = scmp.lt.s32.totalorder %s26, 1
        %s411 = scalar_select %p410, %s26, 1
        %s412 = scalar_lea.vmem %s1, %s411
        %p413 = scmp.lt.s32.totalorder %s27, 1
        %s414 = scalar_select %p413, %s27, 1
        %s415 = smul.addr %s414, 4
        %s416 = smul.addr %s415, 4
        %s417 = scalar_lea.vmem %s2, %s416
        %p418 = scmp.lt.s32.totalorder %s27, 1
        %s419 = scalar_select %p418, %s27, 1
        %s420 = smul.addr %s419, 4
        %s421 = smul.addr %s420, 4
        %s422 = scalar_lea.vmem %s3, %s421
        %p423 = scmp.lt.s32.totalorder %s27, 1
        %s424 = scalar_select %p423, %s27, 1
        %s425 = smul.addr %s424, 4
        %s426 = smul.addr %s425, 4
        %s427 = scalar_lea.vmem %s4, %s426
        %p428 = scmp.lt.s32.totalorder %s27, 1
        %s429 = scalar_select %p428, %s27, 1
        %s430 = smul.addr %s429, 16
        %s431 = smul.addr %s430, 4
        %s432 = scalar_lea.vmem %s5, %s431
        %p433 = scmp.lt.s32.totalorder %s27, 1
        %s434 = scalar_select %p433, %s27, 1
        %s435 = smul.addr %s434, 2
        %s436 = smul.addr %s435, 8
        %s437 = scalar_lea.vmem %s6, %s436
        %p438 = scmp.lt.s32.totalorder %s27, 1
        %s439 = scalar_select %p438, %s27, 1
        %s440 = scalar_lea.vmem %s7, %s439
        %p442 = scmp.eq.s32.totalorder %s27, 0
        // Predicated region
        $region53: #{tpu_custom_call.1} parent=51 // pred_check
          %p443 = pneg %p442
        $region54: #{tpu_custom_call.1} parent=51 // pred_check_branch
          %445 = sbr.rel (%p443) target = $region56
        $region55: #{tpu_custom_call.1} parent=51 // pred_region
          %v446 = vld [vmem:[%s409] sm:$0xff]
          %vm447 = vcmask 261120
          %448 = vst.msk [vmem:[%s405] sm:$0xff] %vm447, %v446
        $region56: #{tpu_custom_call.1} parent=51 // pred_fallthru
          _
        %v449 = vld [vmem:[%s405] sm:$0xff]
        %v450 = vld [vmem:[%s437] sm:$0xff]
        %v451 = vld [vmem:[%s437 + $0x8] sm:$0x1]
        %vm452 = vcmask 261120
        %v453 = vsel %vm452, %v449, 0.0
        %454 = vadd.xlane.f32.xlu0 %v453
        %v455 = vpop.xlane.xlu0 %454
        %v456 = vrcp.pop 32.0
        %v457 = vmul.f32 32.0, %v456
        %v458 = vsub.f32 1.0, %v457
        %v459 = vmul.f32 %v456, %v458
        %v460 = vadd.f32 %v456, %v459
        %vm461 = vweird.f32 %v456
        %v462 = vsel %vm461, %v456, %v460
        %v463 = vmul.f32 %v455, %v462
        %v464 = vsub.f32 %v449, %v463
        %v465 = vmul.f32 %v464, %v464
        %v466 = vsel %vm452, %v465, 0.0
        %467 = vadd.xlane.f32.xlu0 %v466
        %v468 = vpop.xlane.xlu0 %467
        %v469 = vmul.f32 %v468, %v462
        %v470 = vadd.f32 %v469, 1e-05
        %v471 = vrsqrt.pop %v470
        %v472 = vmul.f32 %v471, %v470
        %v473 = vmul.f32 %v472, %v471
        %v474 = vmul.f32 0.5, %v473
        %v475 = vsub.f32 1.5, %v474
        %v476 = vmul.f32 %v471, %v475
        %vm477 = vweird.f32 %v470
        %vm478 = vweird.f32 %v471
        %vm479 = vmor %vm477, %vm478
        %v480 = vsel %vm479, %v471, %v476
        %v481 = vmul.f32 %v464, %v480
        %v482 = vperm.slane %v450, 0
        %v483 = vmul.f32 %v481, %v482
        %v484 = vperm.slane %v450, 1
        %v485 = vadd.f32 %v483, %v484
        %v486 = vpack.c.bf16 %v485, %v485
        %v487 = vld [vmem:[%s417] sm:$0xf]
        %v488 = vld [vmem:[%s417 + $0x4] sm:$0xf]
        %v489 = vld [vmem:[%s417 + $0x8] sm:$0xf]
        %v490 = vld [vmem:[%s417 + $0xc] sm:$0xf]
        %v495 = vunpack.c.l.b16 %v487
        %v496 = vunpack.c.l.b16 %v488
        %v497 = vunpack.c.l.b16 %v489
        %v498 = vunpack.c.l.b16 %v490
        %v499 = vpack.c.b16 %v496, %v495
        %v500 = vpack.c.b16 %v498, %v497
        %v504 = vsel %vm452, %v486, 0
        %506 = vmatpush.bf16.msra.mxu0 0
        %507 = vmatpush.bf16.msra.mxu0 0
        %508 = vmatpush.bf16.msra.mxu0 0
        %509 = vmatpush.bf16.msra.mxu0 0
        %510 = vmatpush.bf16.msra.mxu0 0
        %511 = vmatpush.bf16.msra.mxu0 0
        %512 = vmatpush.bf16.msra.mxu0 %v500
        %513 = vmatpush.bf16.msra.mxu0 %v499
        %514 = vmatmul.bf16.gmra.mxu0 %v504
        %v515 = vpop.f32.mrf.mxu0
        %v516 = vadd.f32 0.0, %v515
        %v517 = vpop.f32.mrf.mxu0
        %518 = vdwg.mxu0
        %v519 = vperm.slane %v450, 2
        %v520 = vadd.f32 %v516, %v519
        %v521 = vmul.f32 %v520, 0.35355338
        %v522 = vperm.slane %v450, 3
        %524 = vrot.lane.b32.xlu0 %v522, 32
        %v525 = vpop.permute.xlu0 %524
        %v527 = vadd.f32 %v516, %v525
        %v528 = vperm.slane %v450, 4
        %530 = vrot.lane.b32.xlu0 %v528, 64
        %v531 = vpop.permute.xlu0 %530
        %v533 = vadd.f32 %v516, %v531
        %535 = vrot.lane.b32.xlu0 %v521, 120
        %v536 = vpop.permute.xlu0 %535
        %538 = vrot.lane.b32.xlu0 %v521, 112
        %v539 = vpop.permute.xlu0 %538
        %541 = vrot.lane.b32.xlu0 %v521, 104
        %v542 = vpop.permute.xlu0 %541
        %545 = vrot.lane.b32.xlu0 %v527, 120
        %v546 = vpop.permute.xlu0 %545
        %548 = vrot.lane.b32.xlu0 %v527, 112
        %v549 = vpop.permute.xlu0 %548
        %551 = vrot.lane.b32.xlu0 %v527, 104
        %v552 = vpop.permute.xlu0 %551
        %555 = vrot.lane.b32.xlu0 %v533, 120
        %v556 = vpop.permute.xlu0 %555
        %558 = vrot.lane.b32.xlu0 %v533, 112
        %v559 = vpop.permute.xlu0 %558
        %561 = vrot.lane.b32.xlu0 %v533, 104
        %v562 = vpop.permute.xlu0 %561
        %v564 = vpack.c.bf16 %v521, %v521
        %v565 = vpack.c.bf16 %v536, %v536
        %v566 = vpack.c.bf16 %v539, %v539
        %v567 = vpack.c.bf16 %v542, %v542
        %v568 = vpack.c.bf16 %v527, %v527
        %v569 = vpack.c.bf16 %v546, %v546
        %v570 = vpack.c.bf16 %v549, %v549
        %v571 = vpack.c.bf16 %v552, %v552
        %v572 = vld [vmem:[%s412] sm:$0x1]
        %v574 = vperm.slane %v572, 0
        %v577 = vunpack.c.l.b16 %v568
        %v578 = vpack.c.b16 %v577, %v577
        %579 = vrot.lane.b32.xlu0 %v578, 96
        %v580 = vpop.permute.xlu0 %579
        %vm581 = vcmask 64512
        %v583 = vsel %vm581, %v564, 0
        %v586 = vsel %vm581, %v580, 0
        %588 = vmatpush.bf16.xpose.msra.mxu0 0
        %589 = vmatpush.bf16.xpose.msra.mxu0 0
        %590 = vmatpush.bf16.xpose.msra.mxu0 0
        %591 = vmatpush.bf16.xpose.msra.mxu0 0
        %592 = vmatpush.bf16.xpose.msra.mxu0 0
        %593 = vmatpush.bf16.xpose.msra.mxu0 0
        %594 = vmatpush.bf16.xpose.msra.mxu0 0
        %595 = vmatpush.bf16.xpose.msra.mxu0 %v586
        %596 = vmatmul.bf16.gmra.mxu0 %v583
        %v597 = vpop.f32.mrf.mxu0
        %v598 = vadd.f32 %v574, %v597
        %v599 = vpop.f32.mrf.mxu0
        %600 = vdwg.mxu0
        %v602 = vunpack.c.l.b16 %v569
        %v603 = vpack.c.b16 %v602, %v602
        %604 = vrot.lane.b32.xlu0 %v603, 96
        %v605 = vpop.permute.xlu0 %604
        %v607 = vsel %vm581, %v565, 0
        %v610 = vsel %vm581, %v605, 0
        %612 = vmatpush.bf16.xpose.msra.mxu0 0
        %613 = vmatpush.bf16.xpose.msra.mxu0 0
        %614 = vmatpush.bf16.xpose.msra.mxu0 0
        %615 = vmatpush.bf16.xpose.msra.mxu0 0
        %616 = vmatpush.bf16.xpose.msra.mxu0 0
        %617 = vmatpush.bf16.xpose.msra.mxu0 0
        %618 = vmatpush.bf16.xpose.msra.mxu0 0
        %619 = vmatpush.bf16.xpose.msra.mxu0 %v610
        %620 = vmatmul.bf16.gmra.mxu0 %v607
        %v621 = vpop.f32.mrf.mxu0
        %v622 = vadd.f32 %v574, %v621
        %v623 = vpop.f32.mrf.mxu0
        %624 = vdwg.mxu0
        %v626 = vunpack.c.l.b16 %v570
        %v627 = vpack.c.b16 %v626, %v626
        %628 = vrot.lane.b32.xlu0 %v627, 96
        %v629 = vpop.permute.xlu0 %628
        %v631 = vsel %vm581, %v566, 0
        %v634 = vsel %vm581, %v629, 0
        %636 = vmatpush.bf16.xpose.msra.mxu0 0
        %637 = vmatpush.bf16.xpose.msra.mxu0 0
        %638 = vmatpush.bf16.xpose.msra.mxu0 0
        %639 = vmatpush.bf16.xpose.msra.mxu0 0
        %640 = vmatpush.bf16.xpose.msra.mxu0 0
        %641 = vmatpush.bf16.xpose.msra.mxu0 0
        %642 = vmatpush.bf16.xpose.msra.mxu0 0
        %643 = vmatpush.bf16.xpose.msra.mxu0 %v634
        %644 = vmatmul.bf16.gmra.mxu0 %v631
        %v645 = vpop.f32.mrf.mxu0
        %v646 = vadd.f32 %v574, %v645
        %v647 = vpop.f32.mrf.mxu0
        %648 = vdwg.mxu0
        %v650 = vunpack.c.l.b16 %v571
        %v651 = vpack.c.b16 %v650, %v650
        %652 = vrot.lane.b32.xlu0 %v651, 96
        %v653 = vpop.permute.xlu0 %652
        %v655 = vsel %vm581, %v567, 0
        %v658 = vsel %vm581, %v653, 0
        %660 = vmatpush.bf16.xpose.msra.mxu0 0
        %661 = vmatpush.bf16.xpose.msra.mxu0 0
        %662 = vmatpush.bf16.xpose.msra.mxu0 0
        %663 = vmatpush.bf16.xpose.msra.mxu0 0
        %664 = vmatpush.bf16.xpose.msra.mxu0 0
        %665 = vmatpush.bf16.xpose.msra.mxu0 0
        %666 = vmatpush.bf16.xpose.msra.mxu0 0
        %667 = vmatpush.bf16.xpose.msra.mxu0 %v658
        %668 = vmatmul.bf16.gmra.mxu0 %v655
        %v669 = vpop.f32.mrf.mxu0
        %v670 = vadd.f32 %v574, %v669
        %v671 = vpop.f32.mrf.mxu0
        %672 = vdwg.mxu0
        %v673 = vsel %vm581, %v598, -inf
        %674 = vmax.xlane.f32.xlu0 %v673
        %v675 = vpop.xlane.xlu0 %674
        %v676 = vsel %vm581, %v622, -inf
        %677 = vmax.xlane.f32.xlu0 %v676
        %v678 = vpop.xlane.xlu0 %677
        %v679 = vsel %vm581, %v646, -inf
        %680 = vmax.xlane.f32.xlu0 %v679
        %v681 = vpop.xlane.xlu0 %680
        %v682 = vsel %vm581, %v670, -inf
        %683 = vmax.xlane.f32.xlu0 %v682
        %v684 = vpop.xlane.xlu0 %683
        %v685 = vsub.f32 %v598, %v675
        %v686 = vsub.f32 %v622, %v678
        %v687 = vsub.f32 %v646, %v681
        %v688 = vsub.f32 %v670, %v684
        %v689 = vmul.f32 %v685, 1.442695
        %v690 = vpow.pop %v689
        %v691 = vmul.f32 %v686, 1.442695
        %v692 = vpow.pop %v691
        %v693 = vmul.f32 %v687, 1.442695
        %v694 = vpow.pop %v693
        %v695 = vmul.f32 %v688, 1.442695
        %v696 = vpow.pop %v695
        %v697 = vsel %vm581, %v690, 0.0
        %698 = vadd.xlane.f32.xlu0 %v697
        %v699 = vpop.xlane.xlu0 %698
        %v700 = vsel %vm581, %v692, 0.0
        %701 = vadd.xlane.f32.xlu0 %v700
        %v702 = vpop.xlane.xlu0 %701
        %v703 = vsel %vm581, %v694, 0.0
        %704 = vadd.xlane.f32.xlu0 %v703
        %v705 = vpop.xlane.xlu0 %704
        %v706 = vsel %vm581, %v696, 0.0
        %707 = vadd.xlane.f32.xlu0 %v706
        %v708 = vpop.xlane.xlu0 %707
        %v709 = vrcp.pop %v699
        %v710 = vrcp.pop %v702
        %v711 = vrcp.pop %v705
        %v712 = vrcp.pop %v708
        %v713 = vmul.f32 %v690, %v709
        %v714 = vmul.f32 %v692, %v710
        %v715 = vmul.f32 %v694, %v711
        %v716 = vmul.f32 %v696, %v712
        %v717 = vpack.c.bf16 %v713, %v713
        %v718 = vpack.c.bf16 %v714, %v714
        %v719 = vpack.c.bf16 %v715, %v715
        %v720 = vpack.c.bf16 %v716, %v716
        %v721 = vpack.c.bf16 %v533, %v533
        %v722 = vpack.c.bf16 %v556, %v556
        %v723 = vpack.c.bf16 %v559, %v559
        %v724 = vpack.c.bf16 %v562, %v562
        %v726 = vunpack.c.l.b16 %v721
        %v727 = vpack.c.b16 %v726, %v726
        %728 = vrot.lane.b32.xlu0 %v727, 64
        %v729 = vpop.permute.xlu0 %728
        %v731 = vsel %vm581, %v717, 0
        %vm733 = vcmask 1043456
        %v735 = vsel %vm733, %v729, 0
        %737 = vmatpush.bf16.msra.mxu0 0
        %738 = vmatpush.bf16.msra.mxu0 0
        %739 = vmatpush.bf16.msra.mxu0 0
        %740 = vmatpush.bf16.msra.mxu0 0
        %741 = vmatpush.bf16.msra.mxu0 0
        %742 = vmatpush.bf16.msra.mxu0 0
        %743 = vmatpush.bf16.msra.mxu0 0
        %744 = vmatpush.bf16.msra.mxu0 %v735
        %745 = vmatmul.bf16.gmra.mxu0 %v731
        %v746 = vpop.f32.mrf.mxu0
        %v747 = vadd.f32 0.0, %v746
        %v748 = vpop.f32.mrf.mxu0
        %749 = vdwg.mxu0
        %v751 = vunpack.c.l.b16 %v722
        %v752 = vpack.c.b16 %v751, %v751
        %753 = vrot.lane.b32.xlu0 %v752, 64
        %v754 = vpop.permute.xlu0 %753
        %v756 = vsel %vm581, %v718, 0
        %v759 = vsel %vm733, %v754, 0
        %761 = vmatpush.bf16.msra.mxu0 0
        %762 = vmatpush.bf16.msra.mxu0 0
        %763 = vmatpush.bf16.msra.mxu0 0
        %764 = vmatpush.bf16.msra.mxu0 0
        %765 = vmatpush.bf16.msra.mxu0 0
        %766 = vmatpush.bf16.msra.mxu0 0
        %767 = vmatpush.bf16.msra.mxu0 0
        %768 = vmatpush.bf16.msra.mxu0 %v759
        %769 = vmatmul.bf16.gmra.mxu0 %v756
        %v770 = vpop.f32.mrf.mxu0
        %v771 = vadd.f32 0.0, %v770
        %v772 = vpop.f32.mrf.mxu0
        %773 = vdwg.mxu0
        %v775 = vunpack.c.l.b16 %v723
        %v776 = vpack.c.b16 %v775, %v775
        %777 = vrot.lane.b32.xlu0 %v776, 64
        %v778 = vpop.permute.xlu0 %777
        %v780 = vsel %vm581, %v719, 0
        %v783 = vsel %vm733, %v778, 0
        %785 = vmatpush.bf16.msra.mxu0 0
        %786 = vmatpush.bf16.msra.mxu0 0
        %787 = vmatpush.bf16.msra.mxu0 0
        %788 = vmatpush.bf16.msra.mxu0 0
        %789 = vmatpush.bf16.msra.mxu0 0
        %790 = vmatpush.bf16.msra.mxu0 0
        %791 = vmatpush.bf16.msra.mxu0 0
        %792 = vmatpush.bf16.msra.mxu0 %v783
        %793 = vmatmul.bf16.gmra.mxu0 %v780
        %v794 = vpop.f32.mrf.mxu0
        %v795 = vadd.f32 0.0, %v794
        %v796 = vpop.f32.mrf.mxu0
        %797 = vdwg.mxu0
        %v799 = vunpack.c.l.b16 %v724
        %v800 = vpack.c.b16 %v799, %v799
        %801 = vrot.lane.b32.xlu0 %v800, 64
        %v802 = vpop.permute.xlu0 %801
        %v804 = vsel %vm581, %v720, 0
        %v807 = vsel %vm733, %v802, 0
        %809 = vmatpush.bf16.msra.mxu0 0
        %810 = vmatpush.bf16.msra.mxu0 0
        %811 = vmatpush.bf16.msra.mxu0 0
        %812 = vmatpush.bf16.msra.mxu0 0
        %813 = vmatpush.bf16.msra.mxu0 0
        %814 = vmatpush.bf16.msra.mxu0 0
        %815 = vmatpush.bf16.msra.mxu0 0
        %816 = vmatpush.bf16.msra.mxu0 %v807
        %817 = vmatmul.bf16.gmra.mxu0 %v804
        %v818 = vpop.f32.mrf.mxu0
        %v819 = vadd.f32 0.0, %v818
        %v820 = vpop.f32.mrf.mxu0
        %821 = vdwg.mxu0
        %823 = vrot.lane.b32.xlu0 %v771, 8
        %v824 = vpop.permute.xlu0 %823
        %827 = vrot.lane.b32.xlu0 %v795, 16
        %v828 = vpop.permute.xlu0 %827
        %831 = vrot.lane.b32.xlu0 %v819, 24
        %v832 = vpop.permute.xlu0 %831
        %v834 = vsel %vm581, %v747, %v824
        %vm835 = vcmask 130048
        %v836 = vsel %vm835, %v834, %v828
        %vm837 = vcmask 195584
        %v838 = vsel %vm837, %v836, %v832
        %v839 = vpack.c.bf16 %v838, %v838
        %v840 = vld [vmem:[%s422] sm:$0xf]
        %v841 = vld [vmem:[%s422 + $0x4] sm:$0xf]
        %v842 = vld [vmem:[%s422 + $0x8] sm:$0xf]
        %v843 = vld [vmem:[%s422 + $0xc] sm:$0xf]
        %v844 = vperm.slane %v450, 5
        %v849 = vunpack.c.l.b16 %v840
        %v850 = vunpack.c.l.b16 %v841
        %v851 = vunpack.c.l.b16 %v842
        %v852 = vunpack.c.l.b16 %v843
        %v853 = vpack.c.b16 %v850, %v849
        %v854 = vpack.c.b16 %v852, %v851
        %v858 = vsel %vm452, %v839, 0
        %860 = vmatpush.bf16.msra.mxu0 0
        %861 = vmatpush.bf16.msra.mxu0 0
        %862 = vmatpush.bf16.msra.mxu0 0
        %863 = vmatpush.bf16.msra.mxu0 0
        %864 = vmatpush.bf16.msra.mxu0 0
        %865 = vmatpush.bf16.msra.mxu0 0
        %866 = vmatpush.bf16.msra.mxu0 %v854
        %867 = vmatpush.bf16.msra.mxu0 %v853
        %868 = vmatmul.bf16.gmra.mxu0 %v858
        %v869 = vpop.f32.mrf.mxu0
        %v870 = vadd.f32 %v844, %v869
        %v871 = vpop.f32.mrf.mxu0
        %872 = vdwg.mxu0
        %v873 = vadd.f32 %v449, %v870
        %v874 = vsel %vm452, %v873, 0.0
        %875 = vadd.xlane.f32.xlu0 %v874
        %v876 = vpop.xlane.xlu0 %875
        %v877 = vmul.f32 %v876, %v462
        %v878 = vsub.f32 %v873, %v877
        %v879 = vmul.f32 %v878, %v878
        %v880 = vsel %vm452, %v879, 0.0
        %881 = vadd.xlane.f32.xlu0 %v880
        %v882 = vpop.xlane.xlu0 %881
        %v883 = vmul.f32 %v882, %v462
        %v884 = vadd.f32 %v883, 1e-05
        %v885 = vrsqrt.pop %v884
        %v886 = vmul.f32 %v885, %v884
        %v887 = vmul.f32 %v886, %v885
        %v888 = vmul.f32 0.5, %v887
        %v889 = vsub.f32 1.5, %v888
        %v890 = vmul.f32 %v885, %v889
        %vm891 = vweird.f32 %v884
        %vm892 = vweird.f32 %v885
        %vm893 = vmor %vm891, %vm892
        %v894 = vsel %vm893, %v885, %v890
        %v895 = vmul.f32 %v878, %v894
        %v896 = vperm.slane %v450, 6
        %v897 = vmul.f32 %v895, %v896
        %v898 = vperm.slane %v450, 7
        %v899 = vadd.f32 %v897, %v898
        %v900 = vpack.c.bf16 %v899, %v899
        %v901 = vld [vmem:[%s427] sm:$0xf]
        %v902 = vld [vmem:[%s427 + $0x4] sm:$0xf]
        %v903 = vld [vmem:[%s427 + $0x8] sm:$0xf]
        %v904 = vld [vmem:[%s427 + $0xc] sm:$0xf]
        %v905 = vld [vmem:[%s440] sm:$0x1]
        %v907 = vperm.slane %v905, 0
        %v913 = vunpack.c.l.b16 %v901
        %v914 = vunpack.c.l.b16 %v902
        %v915 = vunpack.c.l.b16 %v903
        %v916 = vunpack.c.l.b16 %v904
        %v917 = vpack.c.b16 %v914, %v913
        %v918 = vpack.c.b16 %v916, %v915
        %v922 = vsel %vm452, %v900, 0
        %924 = vmatpush.bf16.msra.mxu0 0
        %925 = vmatpush.bf16.msra.mxu0 0
        %926 = vmatpush.bf16.msra.mxu0 0
        %927 = vmatpush.bf16.msra.mxu0 0
        %928 = vmatpush.bf16.msra.mxu0 0
        %929 = vmatpush.bf16.msra.mxu0 0
        %930 = vmatpush.bf16.msra.mxu0 %v918
        %931 = vmatpush.bf16.msra.mxu0 %v917
        %932 = vmatmul.bf16.gmra.mxu0 %v922
        %v933 = vpop.f32.mrf.mxu0
        %v934 = vadd.f32 %v907, %v933
        %v935 = vpop.f32.mrf.mxu0
        %936 = vdwg.mxu0
        %v937 = vmul.f32 %v934, 0.5
        %v938 = vrcp.pop 1.4142135
        %v939 = vmul.f32 1.4142135, %v938
        %v940 = vsub.f32 1.0, %v939
        %v941 = vmul.f32 %v938, %v940
        %v942 = vadd.f32 %v938, %v941
        %vm943 = vweird.f32 %v938
        %v944 = vsel %vm943, %v938, %v942
        %v945 = vmul.f32 %v934, %v944
        %v946 = vmul.f32 %v945, %v945
        %v947 = vmin.f32 16.0, %v946
        %v948 = vmul.f32 %v947, 2.1237322e-06
        %v949 = vadd.f32 %v948, 0.00028619796
        %v950 = vmul.f32 %v947, %v949
        %v951 = vadd.f32 %v950, 0.0036580483
        %v952 = vmul.f32 %v947, %v951
        %v953 = vadd.f32 %v952, 0.05243302
        %v954 = vmul.f32 %v947, %v953
        %v955 = vadd.f32 %v954, 0.18741608
        %v956 = vmul.f32 %v947, %v955
        %v957 = vadd.f32 %v956, 1.1283791
        %v958 = vmul.f32 %v945, %v957
        %v959 = vmul.f32 %v947, 3.8918573e-05
        %v960 = vadd.f32 %v959, 0.001143296
        %v961 = vmul.f32 %v947, %v960
        %v962 = vadd.f32 %v961, 0.014752088
        %v963 = vmul.f32 %v947, %v962
        %v964 = vadd.f32 %v963, 0.112945676
        %v965 = vmul.f32 %v947, %v964
        %v966 = vadd.f32 %v965, 0.4994258
        %v967 = vmul.f32 %v947, %v966
        %v968 = vadd.f32 %v967, 1.0
        %v969 = vrcp.pop %v968
        %v970 = vmul.f32 %v968, %v969
        %v971 = vsub.f32 1.0, %v970
        %v972 = vmul.f32 %v969, %v971
        %v973 = vadd.f32 %v969, %v972
        %vm974 = vweird.f32 %v968
        %vm975 = vweird.f32 %v969
        %vm976 = vmor %vm974, %vm975
        %v977 = vsel %vm976, %v969, %v973
        %v978 = vand.u32 2147483647, %v968
        %vm979 = vcmp.eq.f32.partialorder %v978, 8.507059e+37
        %v980 = vand.u32 %v968, 2147483648
        %v981 = vor.u32 1.1754944e-38, %v980
        %v982 = vsel %vm979, %v981, %v977
        %v983 = vmul.f32 %v958, %v982
        %v984 = vmin.f32 %v983, 1.0
        %v985 = vmax.f32 %v984, -1.0
        %v986 = vadd.f32 %v985, 1.0
        %v987 = vmul.f32 %v937, %v986
        %v988 = vpack.c.bf16 %v987, %v987
        %v989 = vld [vmem:[%s432] sm:$0xf]
        %v990 = vld [vmem:[%s432 + $0x4] sm:$0xf]
        %v991 = vld [vmem:[%s432 + $0x8] sm:$0xf]
        %v992 = vld [vmem:[%s432 + $0xc] sm:$0xf]
        %v993 = vld [vmem:[%s432 + $0x10] sm:$0xf]
        %v994 = vld [vmem:[%s432 + $0x14] sm:$0xf]
        %v995 = vld [vmem:[%s432 + $0x18] sm:$0xf]
        %v996 = vld [vmem:[%s432 + $0x1c] sm:$0xf]
        %v997 = vld [vmem:[%s432 + $0x20] sm:$0xf]
        %v998 = vld [vmem:[%s432 + $0x24] sm:$0xf]
        %v999 = vld [vmem:[%s432 + $0x28] sm:$0xf]
        %v1000 = vld [vmem:[%s432 + $0x2c] sm:$0xf]
        %v1001 = vld [vmem:[%s432 + $0x30] sm:$0xf]
        %v1002 = vld [vmem:[%s432 + $0x34] sm:$0xf]
        %v1003 = vld [vmem:[%s432 + $0x38] sm:$0xf]
        %v1004 = vld [vmem:[%s432 + $0x3c] sm:$0xf]
        %v1005 = vperm.slane %v451, 0
        %v1022 = vunpack.c.l.b16 %v989
        %v1023 = vunpack.c.l.b16 %v990
        %v1024 = vunpack.c.l.b16 %v991
        %v1025 = vunpack.c.l.b16 %v992
        %v1026 = vunpack.c.l.b16 %v993
        %v1027 = vunpack.c.l.b16 %v994
        %v1028 = vunpack.c.l.b16 %v995
        %v1029 = vunpack.c.l.b16 %v996
        %v1030 = vunpack.c.l.b16 %v997
        %v1031 = vunpack.c.l.b16 %v998
        %v1032 = vunpack.c.l.b16 %v999
        %v1033 = vunpack.c.l.b16 %v1000
        %v1034 = vunpack.c.l.b16 %v1001
        %v1035 = vunpack.c.l.b16 %v1002
        %v1036 = vunpack.c.l.b16 %v1003
        %v1037 = vunpack.c.l.b16 %v1004
        %v1038 = vpack.c.b16 %v1023, %v1022
        %v1039 = vpack.c.b16 %v1025, %v1024
        %v1040 = vpack.c.b16 %v1027, %v1026
        %v1041 = vpack.c.b16 %v1029, %v1028
        %v1042 = vpack.c.b16 %v1031, %v1030
        %v1043 = vpack.c.b16 %v1033, %v1032
        %v1044 = vpack.c.b16 %v1035, %v1034
        %v1045 = vpack.c.b16 %v1037, %v1036
        %1054 = vmatpush.bf16.msra.mxu0 %v1045
        %1055 = vmatpush.bf16.msra.mxu0 %v1044
        %1056 = vmatpush.bf16.msra.mxu0 %v1043
        %1057 = vmatpush.bf16.msra.mxu0 %v1042
        %1058 = vmatpush.bf16.msra.mxu0 %v1041
        %1059 = vmatpush.bf16.msra.mxu0 %v1040
        %1060 = vmatpush.bf16.msra.mxu0 %v1039
        %1061 = vmatpush.bf16.msra.mxu0 %v1038
        %1062 = vmatmul.bf16.gmra.mxu0 %v988
        %v1063 = vpop.f32.mrf.mxu0
        %v1064 = vadd.f32 %v1005, %v1063
        %v1065 = vpop.f32.mrf.mxu0
        %1066 = vdwg.mxu0
        %v1067 = vadd.f32 %v873, %v1064
        %1068 = vst.msk [vmem:[%s405] sm:$0xff] %vm452, %v1067
        %s1069 = sand.u32 %s250, 1
        %s1070 = scalar_lea.sflag [#allocation3], %s1069
        %s1071 = sand.u32 %s250, 1
        %s1072 = smul.addr %s1071, 8
        %s1073 = scalar_lea.vmem [#allocation2], %s1072
        // Predicated region
        $region57: #{tpu_custom_call.1} parent=51 // pred_check
          %p1074 = pneg %p260
        $region58: #{tpu_custom_call.1} parent=51 // pred_check_branch
          %1076 = sbr.rel (%p1074) target = $region60
        $region59: #{tpu_custom_call.1} parent=51 // pred_region
          %1078 = vsyncadd %s1070, 0
          %s1079 = smul.addr %s26, 8
          %s1080 = scalar_lea.hbm %s8, %s1079
          %s1082 = sshll.u32 %s1073, 4
          %s1083 = int_to_ptr.vmem [resolvable:$true] %s1082
          %s1084 = sshll.u32 %s1080, 4
          %s1085 = int_to_ptr.hbm [resolvable:$true] %s1084
          %1087 = dma.vmem_to_hbm [thread:$0]  %s1083, 128, %s1085, %s1070
        $region60: #{tpu_custom_call.1} parent=51 // pred_fallthru
          _
      $region52: #{tpu_custom_call.1} parent=5 // pred_fallthru
        _
      %p1088 = scmp.le.s32.totalorder 2, %s17
      // Predicated region
      $region61: #{tpu_custom_call.1} parent=5 // pred_check
        %p1089 = pneg %p1088
      $region62: #{tpu_custom_call.1} parent=5 // pred_check_branch
        %1091 = sbr.rel (%p1089) target = $region64
      $region63: #{tpu_custom_call.1} parent=5 // pred_region
        %s1092 = ssub.s32 %s17, 2
        // Predicated region
        $region65: #{tpu_custom_call.1} parent=63 // pred_check
          %p1093 = pneg %p266
        $region66: #{tpu_custom_call.1} parent=63 // pred_check_branch
          %1095 = sbr.rel (%p1093) target = $region68
        $region67: #{tpu_custom_call.1} parent=63 // pred_region
          %s1096 = sand.u32 %s251, 1
          %s1097 = scalar_lea.sflag [#allocation3], %s1096
          %s1098 = sand.u32 %s251, 1
          %s1099 = smul.addr %s1098, 8
          %s1100 = scalar_lea.vmem [#allocation2], %s1099
          %1102 = dma.done %s1097, 128
        $region68: #{tpu_custom_call.1} parent=63 // pred_fallthru
          _
      $region64: #{tpu_custom_call.1} parent=5 // pred_fallthru
        _
    $region6: #{tpu_custom_call.1} parent=1 // loop_footer
      %s21 = sadd.s32 1, %s17
    $region7: #{tpu_custom_call.1} parent=1 // loop_footer_branch
      %16 = sbr.rel target = $region3
    $region8: #{tpu_custom_call.1} parent=1 // loop_exit
      _
    %1103 = vsyncpa [#allocation3], 1
    %s1104 = scalar_lea.sflag [#allocation3], 1
    %1105 = vsyncpa %s1104, 1

</llo_original>
